<compile_context>
chip_gen: v7x
topology: tpu7x:2x2x1
jax: 0.10.0
libtpu: 0.0.40
codegen_flags: <defaults>
</compile_context>

<pallas_src>
import functools

import jax
import jax.numpy as jnp
from jax.experimental import pallas as pl
from jax.experimental.pallas import tpu as pltpu

# ---- "configer" constants (deterministic, in-script) -----------------------
IGNORE_INDEX = -1          # ce_ignore_index
OHEM_THRESH = 0.7          # loss.params.ohem_thresh
OHEM_MIN_KEPT = 10         # loss.params.ohem_minkeep (>=1)
SEG_LOSS_WEIGHT = 1.0      # network.loss_weights.seg_loss
AUX_LOSS_WEIGHT = 0.4      # network.loss_weights.aux_loss
# ce_weight is None (no per-class weights), reduction = 'elementwise_mean'

# VMEM budget for one pipelined tile (double-buffered inputs + f32 temporaries).
# Chosen so the largest tile still fits v7x's 64 MiB physical VMEM with headroom;
# v5e/v6e have 128 MiB, so it is comfortable there too.
_TILE_VMEM_BUDGET = 32 << 20
_MAX_TILE = 32 * 1024
_VMEM_LIMIT_CAP = 56 << 20          # stay under v7x's 64 MiB physical VMEM


def _per_lane_bytes(c, in_bytes):
    """Approx. VMEM bytes per lane of tile (pipelined blocks + in-kernel temps)."""
    return (2 * 2 * c * in_bytes    # seg + aux logit blocks, double-buffered
            + 2 * 4                 # target block (int32), double-buffered
            + 2 * 4                 # log-prob output block (f32), double-buffered
            + 5 * c * 4)            # in-kernel (1, C, T) f32/int temporaries


def _choose_tile(c, hw, in_bytes, n):
    """Largest 128-multiple lane tile whose pipelined footprint fits the budget."""
    tile = _TILE_VMEM_BUDGET // _per_lane_bytes(c, in_bytes)
    tile = max(128, min(_MAX_TILE, (tile // 128) * 128))
    if hw <= tile:
        tile = hw
    # Megacore (v7x has 2 TensorCores): the grid is the only cross-core axis, so
    # keep at least ~4 total grid steps (~2 per core) when the image is large
    # enough — don't let one huge tile collapse the grid to a single iteration.
    min_steps = 4
    want_tiles = -(-min_steps // max(1, n))            # ceil(min_steps / n)
    if pl.cdiv(hw, tile) < want_tiles and hw >= want_tiles * 128:
        tile = min(tile, max(128, (pl.cdiv(hw, want_tiles) // 128) * 128))
    return tile


def _vmem_limit_bytes(c, tile, in_bytes):
    est = _per_lane_bytes(c, in_bytes) * tile + (2 * 128 * 4)
    # Explicit limit (v5e's scoped default is only 16 MiB), capped below v7x's
    # 64 MiB physical VMEM.
    return int(min(max(est + (8 << 20), 32 << 20), _VMEM_LIMIT_CAP))


def _fused_ce_kernel(target_ref, seg_ref, aux_ref, logp_seg_ref, aux_part_ref,
                     *, ignore_index, hw, tile):
    """Per-tile fused work.  Pixels on lanes, classes on sublanes.

    target_ref: (1, 1, T) int32        seg_ref / aux_ref: (1, C, T) logits
    logp_seg_ref: (1, 1, T) f32        log-softmax at (clamped) target class
    aux_part_ref: (1, 1, 128) f32      lane0 = sum(ce_aux), lane1 = #valid px
    """
    _, c, t_len = seg_ref.shape
    j = pl.program_id(1)

    # The last tile may be ragged: lanes >= hw hold uninitialized data.  Pallas
    # masks the ragged part of the logp_seg store back to HBM, but the aux
    # partial sums are reduced *inside* the kernel, so padded lanes must be
    # masked explicitly here so garbage never reaches the reduction.
    pix = jax.lax.broadcasted_iota(jnp.int32, (1, 1, t_len), 2) + j * tile
    in_bounds = pix < hw

    t = target_ref[...]                                    # (1, 1, T)
    not_ignored = t != ignore_index
    valid = jnp.logical_and(not_ignored, in_bounds)        # aux-loss mask
    t_clamped = jnp.where(not_ignored, t, 0)               # ignore -> class 0 (torch clamp)

    # Shared between seg and aux branches (hoisted: JAX does not CSE iota/broadcast).
    class_idx = jax.lax.broadcasted_iota(jnp.int32, (1, c, t_len), 1)
    onehot = class_idx == t_clamped                        # (1, C, T)

    def log_prob_at_target(logits_ref):
        x = logits_ref[...].astype(jnp.float32)            # cast in VMEM (bf16 inputs ok)
        m = jnp.max(x, axis=1, keepdims=True)              # sublane (XLU) class reduce
        lse = jnp.log(jnp.sum(jnp.exp(x - m), axis=1, keepdims=True)) + m
        x_t = jnp.sum(jnp.where(onehot, x, 0.0), axis=1, keepdims=True)
        return x_t - lse                                   # (1, 1, T)

    # seg branch: only the log-softmax at the target class goes back to HBM;
    # prob (for OHEM) and CE are derived from it in the epilogue.
    logp_seg_ref[...] = log_prob_at_target(seg_ref)

    # aux branch: CE reduced to per-tile partial sums inside the kernel
    # (no full-size per-pixel writeback).
    ce_aux = jnp.where(valid, -log_prob_at_target(aux_ref), 0.0)        # (1, 1, T)
    ce_sum = jnp.sum(ce_aux, axis=2, keepdims=True)                     # (1, 1, 1)
    cnt = jnp.sum(valid.astype(jnp.float32), axis=2, keepdims=True)     # (1, 1, 1)
    lane = jax.lax.broadcasted_iota(jnp.int32, (1, 1, 128), 2)
    aux_part_ref[...] = jnp.where(lane == 0, ce_sum,
                                  jnp.where(lane == 1, cnt, 0.0))


def fused_per_pixel(seg_nchw, aux_nchw, target_nhw, ignore_index=IGNORE_INDEX):
    """Returns (log_p_seg flat (P,), aux partial sums (N, 1, num_tiles*128))."""
    n, c, h, w = seg_nchw.shape
    hw = h * w
    # Free views of the native NCHW layout — no transpose, no pad, no dtype copy.
    seg = seg_nchw.reshape(n, c, hw)
    aux = aux_nchw.reshape(n, c, hw)
    tgt = target_nhw.reshape(n, 1, hw).astype(jnp.int32)

    in_bytes = seg.dtype.itemsize
    tile = _choose_tile(c, hw, in_bytes, n)
    num_tiles = pl.cdiv(hw, tile)

    kernel = functools.partial(_fused_ce_kernel,
                               ignore_index=ignore_index, hw=hw, tile=tile)
    logp_seg, aux_parts = pl.pallas_call(
        kernel,
        out_shape=(jax.ShapeDtypeStruct((n, 1, hw), jnp.float32),
                   jax.ShapeDtypeStruct((n, 1, num_tiles * 128), jnp.float32)),
        grid=(n, num_tiles),
        in_specs=[
            pl.BlockSpec((1, 1, tile), lambda i, j: (i, 0, j)),
            pl.BlockSpec((1, c, tile), lambda i, j: (i, 0, j)),
            pl.BlockSpec((1, c, tile), lambda i, j: (i, 0, j)),
        ],
        out_specs=(
            pl.BlockSpec((1, 1, tile), lambda i, j: (i, 0, j)),
            pl.BlockSpec((1, 1, 128), lambda i, j: (i, 0, j)),
        ),
        compiler_params=pltpu.CompilerParams(
            dimension_semantics=("parallel", "parallel"),
            vmem_limit_bytes=_vmem_limit_bytes(c, tile, in_bytes)),
    )(tgt, seg, aux)
    return logp_seg.reshape(-1), aux_parts


@jax.jit
def fs_aux_ohem_ce_loss(aux_out, seg_out, target):
    """FSAuxOhemCELoss.forward((aux_out, seg_out), target)."""
    tflat = target.reshape(-1).astype(jnp.int32)
    p = tflat.shape[0]

    # Single fused kernel launch over both logits tensors.
    log_p_seg, aux_parts = fused_per_pixel(seg_out, aux_out, target)

    # ---------------- FSOhemCELoss on seg_out ----------------
    not_ignored = tflat != IGNORE_INDEX
    prob_seg = jnp.exp(log_p_seg)                        # softmax prob at clamped target
    ce_seg = jnp.where(not_ignored, -log_p_seg, 0.0)     # CE with ignore_index -> 0

    mask = not_ignored.at[0].set(True)                   # mask[0] = 1 (as in the torch code)
    num_masked = jnp.sum(mask.astype(jnp.int32))

    # k-th smallest masked prob (k <= min_kept) via a small top_k (no full sort).
    k_top = min(OHEM_MIN_KEPT + 1, p)
    masked_prob = jnp.where(mask, prob_seg, jnp.inf)
    neg_smallest, _ = jax.lax.top_k(-masked_prob, k_top)
    smallest = -neg_smallest                             # k_top smallest probs, ascending
    k = jnp.clip(jnp.minimum(jnp.int32(OHEM_MIN_KEPT), num_masked - 1), 0, k_top - 1)
    min_threshold = jnp.take(smallest, k)
    threshold = jnp.maximum(min_threshold, jnp.float32(OHEM_THRESH))

    # Strict '<' and a denominator that can include a forced-in ignored pixel 0
    # (with zero loss) mirror select_loss_matrix.mean() of the torch reference.
    sel = (mask & (prob_seg < threshold)).astype(jnp.float32)
    seg_loss = jnp.sum(ce_seg * sel) / jnp.sum(sel)      # NaN if nothing selected (torch parity)

    # ---------------- FSCELoss on aux_out ----------------
    # _scale_target: nearest-resize of target to aux_out's (H, W); identity here
    # since aux_out shares the target spatial size.
    # TODO(synk): add nearest-neighbor target resize if aux_out's spatial size differs.
    n = aux_out.shape[0]
    parts = aux_parts.reshape(n, -1, 128)
    aux_loss = jnp.sum(parts[..., 0]) / jnp.sum(parts[..., 1])   # mean over non-ignored pixels

    return SEG_LOSS_WEIGHT * seg_loss + AUX_LOSS_WEIGHT * aux_loss


if __name__ == "__main__":
    key = jax.random.PRNGKey(0)
    k1, k2, k3, k4 = jax.random.split(key, 4)

    N, C, H, W = 2, 8, 16, 16
    aux_out = jax.random.normal(k1, (N, C, H, W), dtype=jnp.float32)
    seg_out = jax.random.normal(k2, (N, C, H, W), dtype=jnp.float32)
    target = jax.random.randint(k3, (N, H, W), 0, C, dtype=jnp.int32)
    # Sprinkle some ignore_index labels.
    ignore_mask = jax.random.uniform(k4, (N, H, W)) < 0.1
    target = jnp.where(ignore_mask, jnp.int32(IGNORE_INDEX), target)

    loss = fs_aux_ohem_ce_loss(aux_out, seg_out, target)
    loss = jax.block_until_ready(loss)
    print("KERNEL_OK")
</pallas_src>

<mosaic_0001>
module attributes {stable_mosaic.version = 11 : i64} {
  func.func @_fused_ce_kernel(%arg0: i32, %arg1: i32, %arg2: memref<1x1x128xi32, #tpu.memory_space<vmem>>, %arg3: memref<1x8x128xf32, #tpu.memory_space<vmem>>, %arg4: memref<1x8x128xf32, #tpu.memory_space<vmem>>, %arg5: memref<1x1x128xf32, #tpu.memory_space<vmem>>, %arg6: memref<1x1x128xf32, #tpu.memory_space<vmem>>) attributes {dimension_semantics = [#tpu.dimension_semantics<parallel>, #tpu.dimension_semantics<parallel>], iteration_bounds = array<i64: 2, 2>, scalar_prefetch = 0 : i64, scratch_operands = 0 : i64, tpu.core_type = #tpu.core_type<tc>, window_params = [{transform_indices = @transform_0, window_bounds = array<i64: 1, 1, 128>}, {transform_indices = @transform_1, window_bounds = array<i64: 1, 8, 128>}, {transform_indices = @transform_2, window_bounds = array<i64: 1, 8, 128>}, {transform_indices = @transform_3, window_bounds = array<i64: 1, 1, 128>}, {transform_indices = @transform_4, window_bounds = array<i64: 1, 1, 128>}]} {
    %0 = tpu.iota {dimensions = array<i32: 2>} : vector<1x1x128xi32>
    %c128_i32 = arith.constant 128 : i32
    %1 = arith.muli %arg1, %c128_i32 : i32
    %2 = vector.broadcast %1 : i32 to vector<1x1x128xi32>
    %3 = arith.addi %0, %2 : vector<1x1x128xi32>
    %c256_i32 = arith.constant 256 : i32
    %4 = vector.broadcast %c256_i32 : i32 to vector<1x1x128xi32>
    %5 = arith.cmpi slt, %3, %4 : vector<1x1x128xi32>
    %c0 = arith.constant 0 : index
    %c0_0 = arith.constant 0 : index
    %c0_1 = arith.constant 0 : index
    %6 = vector.load %arg2[%c0, %c0_0, %c0_1] : memref<1x1x128xi32, #tpu.memory_space<vmem>>, vector<1x1x128xi32>
    %c-1_i32 = arith.constant -1 : i32
    %7 = vector.broadcast %c-1_i32 : i32 to vector<1x1x128xi32>
    %8 = arith.cmpi ne, %6, %7 : vector<1x1x128xi32>
    %9 = arith.andi %8, %5 : vector<1x1x128xi1>
    %c0_i32 = arith.constant 0 : i32
    %10 = vector.broadcast %c0_i32 : i32 to vector<1x1x128xi32>
    %11 = arith.select %8, %6, %10 : vector<1x1x128xi1>, vector<1x1x128xi32>
    %12 = tpu.iota {dimensions = array<i32: 1>} : vector<1x8x128xi32>
    %13 = vector.broadcast %11 : vector<1x1x128xi32> to vector<1x8x128xi32>
    %14 = arith.cmpi eq, %12, %13 : vector<1x8x128xi32>
    %c0_2 = arith.constant 0 : index
    %c0_3 = arith.constant 0 : index
    %c0_4 = arith.constant 0 : index
    %15 = vector.load %arg3[%c0_2, %c0_3, %c0_4] : memref<1x8x128xf32, #tpu.memory_space<vmem>>, vector<1x8x128xf32>
    %cst = arith.constant dense<0xFF800000> : vector<1x128xf32>
    %16 = vector.multi_reduction <maximumf>, %15, %cst [1] : vector<1x8x128xf32> to vector<1x128xf32>
    %17 = vector.shape_cast %16 : vector<1x128xf32> to vector<1x1x128xf32>
    %18 = vector.broadcast %17 : vector<1x1x128xf32> to vector<1x8x128xf32>
    %19 = arith.subf %15, %18 : vector<1x8x128xf32>
    %20 = math.exp %19 : vector<1x8x128xf32>
    %cst_5 = arith.constant dense<0.000000e+00> : vector<1x128xf32>
    %21 = vector.multi_reduction <add>, %20, %cst_5 [1] : vector<1x8x128xf32> to vector<1x128xf32>
    %22 = vector.shape_cast %21 : vector<1x128xf32> to vector<1x1x128xf32>
    %23 = math.log %22 : vector<1x1x128xf32>
    %24 = arith.addf %23, %17 : vector<1x1x128xf32>
    %cst_6 = arith.constant 0.000000e+00 : f32
    %25 = vector.broadcast %cst_6 : f32 to vector<1x8x128xf32>
    %26 = arith.select %14, %15, %25 : vector<1x8x128xi1>, vector<1x8x128xf32>
    %cst_7 = arith.constant dense<0.000000e+00> : vector<1x128xf32>
    %27 = vector.multi_reduction <add>, %26, %cst_7 [1] : vector<1x8x128xf32> to vector<1x128xf32>
    %28 = vector.shape_cast %27 : vector<1x128xf32> to vector<1x1x128xf32>
    %29 = arith.subf %28, %24 : vector<1x1x128xf32>
    %c0_8 = arith.constant 0 : index
    %c0_9 = arith.constant 0 : index
    %c0_10 = arith.constant 0 : index
    %30 = vector.load %arg5[%c0_8, %c0_9, %c0_10] : memref<1x1x128xf32, #tpu.memory_space<vmem>>, vector<1x1x128xf32>
    tpu.vector_store %arg5[%c0_8, %c0_9, %c0_10], %29 {strides = array<i32>} : memref<1x1x128xf32, #tpu.memory_space<vmem>>, vector<1x1x128xf32>,
    %c0_11 = arith.constant 0 : index
    %c0_12 = arith.constant 0 : index
    %c0_13 = arith.constant 0 : index
    %31 = vector.load %arg4[%c0_11, %c0_12, %c0_13] : memref<1x8x128xf32, #tpu.memory_space<vmem>>, vector<1x8x128xf32>
    %cst_14 = arith.constant dense<0xFF800000> : vector<1x128xf32>
    %32 = vector.multi_reduction <maximumf>, %31, %cst_14 [1] : vector<1x8x128xf32> to vector<1x128xf32>
    %33 = vector.shape_cast %32 : vector<1x128xf32> to vector<1x1x128xf32>
    %34 = vector.broadcast %33 : vector<1x1x128xf32> to vector<1x8x128xf32>
    %35 = arith.subf %31, %34 : vector<1x8x128xf32>
    %36 = math.exp %35 : vector<1x8x128xf32>
    %cst_15 = arith.constant dense<0.000000e+00> : vector<1x128xf32>
    %37 = vector.multi_reduction <add>, %36, %cst_15 [1] : vector<1x8x128xf32> to vector<1x128xf32>
    %38 = vector.shape_cast %37 : vector<1x128xf32> to vector<1x1x128xf32>
    %39 = math.log %38 : vector<1x1x128xf32>
    %40 = arith.addf %39, %33 : vector<1x1x128xf32>
    %cst_16 = arith.constant 0.000000e+00 : f32
    %41 = vector.broadcast %cst_16 : f32 to vector<1x8x128xf32>
    %42 = arith.select %14, %31, %41 : vector<1x8x128xi1>, vector<1x8x128xf32>
    %cst_17 = arith.constant dense<0.000000e+00> : vector<1x128xf32>
    %43 = vector.multi_reduction <add>, %42, %cst_17 [1] : vector<1x8x128xf32> to vector<1x128xf32>
    %44 = vector.shape_cast %43 : vector<1x128xf32> to vector<1x1x128xf32>
    %45 = arith.subf %44, %40 : vector<1x1x128xf32>
    %cst_18 = arith.constant 0.000000e+00 : f32
    %46 = vector.broadcast %cst_18 : f32 to vector<1x1x128xf32>
    %47 = arith.subf %46, %45 : vector<1x1x128xf32>
    %cst_19 = arith.constant 0.000000e+00 : f32
    %48 = vector.broadcast %cst_19 : f32 to vector<1x1x128xf32>
    %49 = arith.select %9, %47, %48 : vector<1x1x128xi1>, vector<1x1x128xf32>
    %cst_20 = arith.constant dense<0.000000e+00> : vector<1x1xf32>
    %50 = vector.multi_reduction <add>, %49, %cst_20 [2] : vector<1x1x128xf32> to vector<1x1xf32>
    %51 = vector.shape_cast %50 : vector<1x1xf32> to vector<1x1x1xf32>
    %52 = arith.extui %9 : vector<1x1x128xi1> to vector<1x1x128xi32>
    %53 = arith.sitofp %52 : vector<1x1x128xi32> to vector<1x1x128xf32>
    %cst_21 = arith.constant dense<0.000000e+00> : vector<1x1xf32>
    %54 = vector.multi_reduction <add>, %53, %cst_21 [2] : vector<1x1x128xf32> to vector<1x1xf32>
    %55 = vector.shape_cast %54 : vector<1x1xf32> to vector<1x1x1xf32>
    %56 = tpu.iota {dimensions = array<i32: 2>} : vector<1x1x128xi32>
    %c0_i32_22 = arith.constant 0 : i32
    %57 = vector.broadcast %c0_i32_22 : i32 to vector<1x1x128xi32>
    %58 = arith.cmpi eq, %56, %57 : vector<1x1x128xi32>
    %c1_i32 = arith.constant 1 : i32
    %59 = vector.broadcast %c1_i32 : i32 to vector<1x1x128xi32>
    %60 = arith.cmpi eq, %56, %59 : vector<1x1x128xi32>
    %cst_23 = arith.constant 0.000000e+00 : f32
    %61 = vector.shape_cast %55 : vector<1x1x1xf32> to vector<1x1x1xf32>
    %62 = vector.broadcast %61 : vector<1x1x1xf32> to vector<1x1x128xf32>
    %63 = vector.broadcast %cst_23 : f32 to vector<1x1x128xf32>
    %64 = arith.select %60, %62, %63 : vector<1x1x128xi1>, vector<1x1x128xf32>
    %65 = vector.shape_cast %51 : vector<1x1x1xf32> to vector<1x1x1xf32>
    %66 = vector.broadcast %65 : vector<1x1x1xf32> to vector<1x1x128xf32>
    %67 = arith.select %58, %66, %64 : vector<1x1x128xi1>, vector<1x1x128xf32>
    %c0_24 = arith.constant 0 : index
    %c0_25 = arith.constant 0 : index
    %c0_26 = arith.constant 0 : index
    %68 = vector.load %arg6[%c0_24, %c0_25, %c0_26] : memref<1x1x128xf32, #tpu.memory_space<vmem>>, vector<1x1x128xf32>
    tpu.vector_store %arg6[%c0_24, %c0_25, %c0_26], %67 {strides = array<i32>} : memref<1x1x128xf32, #tpu.memory_space<vmem>>, vector<1x1x128xf32>,
    return
  }
  func.func @transform_0(%arg0: i32, %arg1: i32) -> (i32, i32, i32) {
    %c0_i32 = arith.constant 0 : i32
    %c0_i32_0 = arith.constant 0 : i32
    return %arg0, %c0_i32, %arg1 : i32, i32, i32
  }
  func.func @transform_1(%arg0: i32, %arg1: i32) -> (i32, i32, i32) {
    %c0_i32 = arith.constant 0 : i32
    %c0_i32_0 = arith.constant 0 : i32
    return %arg0, %c0_i32, %arg1 : i32, i32, i32
  }
  func.func @transform_2(%arg0: i32, %arg1: i32) -> (i32, i32, i32) {
    %c0_i32 = arith.constant 0 : i32
    %c0_i32_0 = arith.constant 0 : i32
    return %arg0, %c0_i32, %arg1 : i32, i32, i32
  }
  func.func @transform_3(%arg0: i32, %arg1: i32) -> (i32, i32, i32) {
    %c0_i32 = arith.constant 0 : i32
    %c0_i32_0 = arith.constant 0 : i32
    return %arg0, %c0_i32, %arg1 : i32, i32, i32
  }
  func.func @transform_4(%arg0: i32, %arg1: i32) -> (i32, i32, i32) {
    %c0_i32 = arith.constant 0 : i32
    %c0_i32_0 = arith.constant 0 : i32
    return %arg0, %c0_i32, %arg1 : i32, i32, i32
  }
}

</mosaic_0001>

<llo_original>
// kernel: fs_aux_ohem_ce_loss.1
$region0: #{fs_aux_ohem_ce_loss.1}
  #allocation0 [shape = 'u32[]', space=smem, size = 0x4, offset = 0x4, fixed_abs, tag = 'smem constant byte address 0x4 - core index']
  #allocation1 [shape = 'u32[144,128]{1,0:T(1,128)}', space=vmem, size = 0x12000, scoped, tag = 'internal scratch']
  %s0 = inlined_call_operand.vmem [shape: s32[2,1,256], index: 0, kind: input, shape index: {}]
  %s1 = inlined_call_operand.vmem [shape: f32[2,8,256], index: 1, kind: input, shape index: {}]
  %s2 = inlined_call_operand.vmem [shape: f32[2,8,256], index: 2, kind: input, shape index: {}]
  %s3 = inlined_call_operand.vmem [shape: f32[2,1,256], index: 3, kind: output, shape index: {0}]
  %s4 = inlined_call_operand.vmem [shape: f32[2,1,256], index: 4, kind: output, shape index: {1}]
  %5 = xla_tuple %s3, %s4
  %s6 = sld [smem:[#allocation0]]
  $region53: #{fs_aux_ohem_ce_loss.1} parent=0
    _
  %s8 = ssub.s32 1, %s6
  %s9 = scalar_select 0, %s8, %s6
  loop: start=0, step=1, limit=6
  $region2: #{fs_aux_ohem_ce_loss.1} parent=0 // loop_pre_header
    _
  $region3: #{fs_aux_ohem_ce_loss.1} parent=0 // loop_header
    %s11 = sphi 0, %s15
    %p12 = scmp.ge.s32.totalorder %s11, 6
    %s18 = sphi 0, %s30
    %s19 = sphi 0, %s26
    %s20 = sphi 0, %s18
    %s21 = sphi 0, %s19
    %s22 = sphi 0, %s20
    %s23 = sphi 0, %s21
    %s35 = sphi 0, %s37
    %s38 = sphi 0, %s35
    %s39 = sphi 0, %s38
    %s55 = sphi 0, %s39
    %s63 = sphi 0, %s65
    %s66 = sphi 0, %s63
    %s67 = sphi 0, %s66
    %s83 = sphi 0, %s67
    %s91 = sphi 0, %s93
    %s94 = sphi 0, %s91
    %s95 = sphi 0, %s94
    %s111 = sphi 0, %s95
    %s119 = sphi 0, %s121
    %s122 = sphi 0, %s119
    %s123 = sphi 0, %s122
    %s139 = sphi 0, %s123
    %s147 = sphi 0, %s149
    %s150 = sphi 0, %s147
    %s151 = sphi 0, %s150
    %s167 = sphi 0, %s151
  $region4: #{fs_aux_ohem_ce_loss.1} parent=0 // loop_header_branch
    %14 = sbr.rel (%p12) target = $region8
  $region5: #{fs_aux_ohem_ce_loss.1} parent=0 // loop_body
    %s16 = ssub.s32 %s11, 1
    %s17 = ssub.s32 %s11, 2
    %s24 = sadd.s32 1, %s19
    %p25 = scmp.ge.s32.totalorder %s24, 2
    %s26 = scalar_select %p25, 0, %s24
    %s27 = sadd.s32 1, %s18
    %s28 = scalar_select %p25, %s27, %s18
    %p29 = scmp.ge.s32.totalorder %s28, 2
    %s30 = scalar_select %p29, 0, %s28
    %s31 = ssub.s32 %s18, %s30
    %s32 = ssub.s32 %s19, %s26
    %s33 = sor.u32 %s31, %s32
    %p34 = scmp.eq.s32.totalorder %s33, 0
    %s36 = sadd.s32 %s35, 1
    %s37 = scalar_select %p34, %s35, %s36
    %p40 = pneg %p34
    %p41 = scmp.eq.s32.totalorder %s11, 3
    %p42 = por %p40, %p41
    %p43 = scmp.ne.s32.totalorder %s35, %s38
    %p44 = scmp.eq.s32.totalorder %s11, 0
    %p45 = por %p43, %p44
    %p46 = scmp.ne.s32.totalorder %s35, %s38
    %p47 = scmp.eq.s32.totalorder %s16, 3
    %p48 = por %p46, %p47
    %p49 = scmp.ne.s32.totalorder %s38, %s39
    %p50 = scmp.eq.s32.totalorder %s16, 0
    %p51 = por %p49, %p50
    %p52 = scmp.ne.s32.totalorder %s38, %s39
    %p53 = scmp.eq.s32.totalorder %s17, 3
    %p54 = por %p52, %p53
    %p56 = scmp.ne.s32.totalorder %s39, %s55
    %p57 = scmp.eq.s32.totalorder %s17, 0
    %p58 = por %p56, %p57
    %s59 = ssub.s32 %s18, %s30
    %s60 = ssub.s32 %s19, %s26
    %s61 = sor.u32 %s59, %s60
    %p62 = scmp.eq.s32.totalorder %s61, 0
    %s64 = sadd.s32 %s63, 1
    %s65 = scalar_select %p62, %s63, %s64
    %p68 = pneg %p62
    %p69 = scmp.eq.s32.totalorder %s11, 3
    %p70 = por %p68, %p69
    %p71 = scmp.ne.s32.totalorder %s63, %s66
    %p72 = scmp.eq.s32.totalorder %s11, 0
    %p73 = por %p71, %p72
    %p74 = scmp.ne.s32.totalorder %s63, %s66
    %p75 = scmp.eq.s32.totalorder %s16, 3
    %p76 = por %p74, %p75
    %p77 = scmp.ne.s32.totalorder %s66, %s67
    %p78 = scmp.eq.s32.totalorder %s16, 0
    %p79 = por %p77, %p78
    %p80 = scmp.ne.s32.totalorder %s66, %s67
    %p81 = scmp.eq.s32.totalorder %s17, 3
    %p82 = por %p80, %p81
    %p84 = scmp.ne.s32.totalorder %s67, %s83
    %p85 = scmp.eq.s32.totalorder %s17, 0
    %p86 = por %p84, %p85
    %s87 = ssub.s32 %s18, %s30
    %s88 = ssub.s32 %s19, %s26
    %s89 = sor.u32 %s87, %s88
    %p90 = scmp.eq.s32.totalorder %s89, 0
    %s92 = sadd.s32 %s91, 1
    %s93 = scalar_select %p90, %s91, %s92
    %p96 = pneg %p90
    %p97 = scmp.eq.s32.totalorder %s11, 3
    %p98 = por %p96, %p97
    %p99 = scmp.ne.s32.totalorder %s91, %s94
    %p100 = scmp.eq.s32.totalorder %s11, 0
    %p101 = por %p99, %p100
    %p102 = scmp.ne.s32.totalorder %s91, %s94
    %p103 = scmp.eq.s32.totalorder %s16, 3
    %p104 = por %p102, %p103
    %p105 = scmp.ne.s32.totalorder %s94, %s95
    %p106 = scmp.eq.s32.totalorder %s16, 0
    %p107 = por %p105, %p106
    %p108 = scmp.ne.s32.totalorder %s94, %s95
    %p109 = scmp.eq.s32.totalorder %s17, 3
    %p110 = por %p108, %p109
    %p112 = scmp.ne.s32.totalorder %s95, %s111
    %p113 = scmp.eq.s32.totalorder %s17, 0
    %p114 = por %p112, %p113
    %s115 = ssub.s32 %s18, %s30
    %s116 = ssub.s32 %s19, %s26
    %s117 = sor.u32 %s115, %s116
    %p118 = scmp.eq.s32.totalorder %s117, 0
    %s120 = sadd.s32 %s119, 1
    %s121 = scalar_select %p118, %s119, %s120
    %p124 = pneg %p118
    %p125 = scmp.eq.s32.totalorder %s11, 3
    %p126 = por %p124, %p125
    %p127 = scmp.ne.s32.totalorder %s119, %s122
    %p128 = scmp.eq.s32.totalorder %s11, 0
    %p129 = por %p127, %p128
    %p130 = scmp.ne.s32.totalorder %s119, %s122
    %p131 = scmp.eq.s32.totalorder %s16, 3
    %p132 = por %p130, %p131
    %p133 = scmp.ne.s32.totalorder %s122, %s123
    %p134 = scmp.eq.s32.totalorder %s16, 0
    %p135 = por %p133, %p134
    %p136 = scmp.ne.s32.totalorder %s122, %s123
    %p137 = scmp.eq.s32.totalorder %s17, 3
    %p138 = por %p136, %p137
    %p140 = scmp.ne.s32.totalorder %s123, %s139
    %p141 = scmp.eq.s32.totalorder %s17, 0
    %p142 = por %p140, %p141
    %s143 = ssub.s32 %s18, %s30
    %s144 = ssub.s32 %s19, %s26
    %s145 = sor.u32 %s143, %s144
    %p146 = scmp.eq.s32.totalorder %s145, 0
    %s148 = sadd.s32 %s147, 1
    %s149 = scalar_select %p146, %s147, %s148
    %p152 = pneg %p146
    %p153 = scmp.eq.s32.totalorder %s11, 3
    %p154 = por %p152, %p153
    %p155 = scmp.ne.s32.totalorder %s147, %s150
    %p156 = scmp.eq.s32.totalorder %s11, 0
    %p157 = por %p155, %p156
    %p158 = scmp.ne.s32.totalorder %s147, %s150
    %p159 = scmp.eq.s32.totalorder %s16, 3
    %p160 = por %p158, %p159
    %p161 = scmp.ne.s32.totalorder %s150, %s151
    %p162 = scmp.eq.s32.totalorder %s16, 0
    %p163 = por %p161, %p162
    %p164 = scmp.ne.s32.totalorder %s150, %s151
    %p165 = scmp.eq.s32.totalorder %s17, 3
    %p166 = por %p164, %p165
    %p168 = scmp.ne.s32.totalorder %s151, %s167
    %p169 = scmp.eq.s32.totalorder %s17, 0
    %p170 = por %p168, %p169
    %p171 = scmp.le.s32.totalorder 1, %s11
    %p172 = scmp.lt.s32.totalorder %s11, 5
    %p173 = pnand %p171, %p172
    %p174 = pneg %p173
    // Predicated region
    $region9: #{fs_aux_ohem_ce_loss.1} parent=5 // pred_check
      _
    $region10: #{fs_aux_ohem_ce_loss.1} parent=5 // pred_check_branch
      %176 = sbr.rel (%p173) target = $region12
    $region11: #{fs_aux_ohem_ce_loss.1} parent=5 // pred_region
      %s177 = ssub.s32 %s11, 1
    $region12: #{fs_aux_ohem_ce_loss.1} parent=5 // pred_fallthru
      _
    %p178 = scmp.lt.s32.totalorder %s11, 4
    // Predicated region
    $region13: #{fs_aux_ohem_ce_loss.1} parent=5 // pred_check
      %p179 = pneg %p178
    $region14: #{fs_aux_ohem_ce_loss.1} parent=5 // pred_check_branch
      %181 = sbr.rel (%p179) target = $region16
    $region15: #{fs_aux_ohem_ce_loss.1} parent=5 // pred_region
      // Predicated region
      $region17: #{fs_aux_ohem_ce_loss.1} parent=15 // pred_check
        %p182 = pneg %p45
      $region18: #{fs_aux_ohem_ce_loss.1} parent=15 // pred_check_branch
        %184 = sbr.rel (%p182) target = $region20
      $region19: #{fs_aux_ohem_ce_loss.1} parent=15 // pred_region
        %p185 = scmp.lt.s32.totalorder %s18, 1
        %s186 = scalar_select %p185, %s18, 1
        %p187 = scmp.lt.s32.totalorder %s19, 1
        %s188 = scalar_select %p187, %s19, 1
        %s189 = smul.addr %s186, 2
        %s190 = sadd.s32 %s188, %s189
        %s191 = scalar_lea.vmem %s0, %s190
      $region20: #{fs_aux_ohem_ce_loss.1} parent=15 // pred_fallthru
        _
      // Predicated region
      $region21: #{fs_aux_ohem_ce_loss.1} parent=15 // pred_check
        %p192 = pneg %p73
      $region22: #{fs_aux_ohem_ce_loss.1} parent=15 // pred_check_branch
        %194 = sbr.rel (%p192) target = $region24
      $region23: #{fs_aux_ohem_ce_loss.1} parent=15 // pred_region
        %p195 = scmp.lt.s32.totalorder %s18, 1
        %s196 = scalar_select %p195, %s18, 1
        %p197 = scmp.lt.s32.totalorder %s19, 1
        %s198 = scalar_select %p197, %s19, 1
        %s199 = smul.addr %s196, 2
        %s200 = sadd.s32 %s198, %s199
        %s201 = smul.addr %s200, 8
        %s202 = scalar_lea.vmem %s1, %s201
      $region24: #{fs_aux_ohem_ce_loss.1} parent=15 // pred_fallthru
        _
      // Predicated region
      $region25: #{fs_aux_ohem_ce_loss.1} parent=15 // pred_check
        %p203 = pneg %p101
      $region26: #{fs_aux_ohem_ce_loss.1} parent=15 // pred_check_branch
        %205 = sbr.rel (%p203) target = $region28
      $region27: #{fs_aux_ohem_ce_loss.1} parent=15 // pred_region
        %p206 = scmp.lt.s32.totalorder %s18, 1
        %s207 = scalar_select %p206, %s18, 1
        %p208 = scmp.lt.s32.totalorder %s19, 1
        %s209 = scalar_select %p208, %s19, 1
        %s210 = smul.addr %s207, 2
        %s211 = sadd.s32 %s209, %s210
        %s212 = smul.addr %s211, 8
        %s213 = scalar_lea.vmem %s2, %s212
      $region28: #{fs_aux_ohem_ce_loss.1} parent=15 // pred_fallthru
        _
    $region16: #{fs_aux_ohem_ce_loss.1} parent=5 // pred_fallthru
      _
    %p214 = scmp.le.s32.totalorder 1, %s11
    %p215 = scmp.lt.s32.totalorder %s11, 5
    %p216 = pnand %p214, %p215
    %p217 = pneg %p216
    // Predicated region
    $region29: #{fs_aux_ohem_ce_loss.1} parent=5 // pred_check
      _
    $region30: #{fs_aux_ohem_ce_loss.1} parent=5 // pred_check_branch
      %219 = sbr.rel (%p216) target = $region32
    $region31: #{fs_aux_ohem_ce_loss.1} parent=5 // pred_region
      %s220 = ssub.s32 %s11, 1
      %p221 = scmp.lt.s32.totalorder %s20, 1
      %s222 = scalar_select %p221, %s20, 1
      %p223 = scmp.lt.s32.totalorder %s21, 1
      %s224 = scalar_select %p223, %s21, 1
      %s225 = smul.addr %s222, 2
      %s226 = sadd.s32 %s224, %s225
      %s227 = scalar_lea.vmem %s0, %s226
      %p228 = pneg %p51
      %p229 = pneg %p48
      %p230 = scmp.lt.s32.totalorder %s20, 1
      %s231 = scalar_select %p230, %s20, 1
      %p232 = scmp.lt.s32.totalorder %s21, 1
      %s233 = scalar_select %p232, %s21, 1
      %s234 = smul.addr %s231, 2
      %s235 = sadd.s32 %s233, %s234
      %s236 = smul.addr %s235, 8
      %s237 = scalar_lea.vmem %s1, %s236
      %p238 = pneg %p79
      %p239 = pneg %p76
      %p240 = scmp.lt.s32.totalorder %s20, 1
      %s241 = scalar_select %p240, %s20, 1
      %p242 = scmp.lt.s32.totalorder %s21, 1
      %s243 = scalar_select %p242, %s21, 1
      %s244 = smul.addr %s241, 2
      %s245 = sadd.s32 %s243, %s244
      %s246 = smul.addr %s245, 8
      %s247 = scalar_lea.vmem %s2, %s246
      %p248 = pneg %p107
      %p249 = pneg %p104
      %p250 = pneg %p135
      %p251 = pneg %p132
      %p252 = scmp.lt.s32.totalorder %s20, 1
      %s253 = scalar_select %p252, %s20, 1
      %p254 = scmp.lt.s32.totalorder %s21, 1
      %s255 = scalar_select %p254, %s21, 1
      %s256 = smul.addr %s253, 2
      %s257 = sadd.s32 %s255, %s256
      %s258 = scalar_lea.vmem %s3, %s257
      %p259 = pneg %p163
      %p260 = pneg %p160
      %p261 = scmp.lt.s32.totalorder %s20, 1
      %s262 = scalar_select %p261, %s20, 1
      %p263 = scmp.lt.s32.totalorder %s21, 1
      %s264 = scalar_select %p263, %s21, 1
      %s265 = smul.addr %s262, 2
      %s266 = sadd.s32 %s264, %s265
      %s267 = scalar_lea.vmem %s4, %s266
      %p268 = scmp.lt.s32.totalorder %s20, 1
      %s269 = scalar_select %p268, %s20, 1
      %p270 = scmp.lt.s32.totalorder %s21, 1
      %s271 = scalar_select %p270, %s21, 1
      %s272 = smul.addr %s269, 2
      %s273 = sadd.s32 %s271, %s272
      %s274 = scalar_lea.vmem %s0, %s273
      %p275 = scmp.lt.s32.totalorder %s20, 1
      %s276 = scalar_select %p275, %s20, 1
      %p277 = scmp.lt.s32.totalorder %s21, 1
      %s278 = scalar_select %p277, %s21, 1
      %s279 = smul.addr %s276, 2
      %s280 = sadd.s32 %s278, %s279
      %s281 = smul.addr %s280, 8
      %s282 = scalar_lea.vmem %s1, %s281
      %p283 = scmp.lt.s32.totalorder %s20, 1
      %s284 = scalar_select %p283, %s20, 1
      %p285 = scmp.lt.s32.totalorder %s21, 1
      %s286 = scalar_select %p285, %s21, 1
      %s287 = smul.addr %s284, 2
      %s288 = sadd.s32 %s286, %s287
      %s289 = smul.addr %s288, 8
      %s290 = scalar_lea.vmem %s2, %s289
      %p291 = scmp.lt.s32.totalorder %s20, 1
      %s292 = scalar_select %p291, %s20, 1
      %p293 = scmp.lt.s32.totalorder %s21, 1
      %s294 = scalar_select %p293, %s21, 1
      %s295 = smul.addr %s292, 2
      %s296 = sadd.s32 %s294, %s295
      %s297 = scalar_lea.vmem %s3, %s296
      %p298 = scmp.lt.s32.totalorder %s20, 1
      %s299 = scalar_select %p298, %s20, 1
      %p300 = scmp.lt.s32.totalorder %s21, 1
      %s301 = scalar_select %p300, %s21, 1
      %s302 = smul.addr %s299, 2
      %s303 = sadd.s32 %s301, %s302
      %s304 = scalar_lea.vmem %s4, %s303
      %v305 = vlaneseq
      %v306 = vand.u32 %v305, 127
      %s307 = smul.u32 %s21, 128
      %v308 = vstv %s307
      %v309 = vadd.s32 %v306, %v308
      %vm310 = vcmp.lt.s32.totalorder %v309, 256
      %v311 = vld [vmem:[%s274] sm:$0x1]
      %vm312 = vcmp.ne.s32.totalorder %v311, 4294967295
      %vm313 = vmand %vm312, %vm310
      %v314 = vsel %vm312, %v311, 0
      %v315 = vlaneseq
      %v316 = vshrl.u32 %v315, 7
      %v317 = vlaneseq
      %v318 = vshrl.u32 %v317, 7
      %v319 = vsub.s32 0, %v318
      %v320 = vrot.slane %v314, %v319
      %vm321 = vcmp.eq.s32.totalorder %v316, %v320
      %v322 = vld [vmem:[%s282] sm:$0xff]
      %v323 = vrot.slane %v322, 4
      %v324 = vmax.f32 %v322, %v323
      %v325 = vrot.slane %v324, 2
      %v326 = vmax.f32 %v324, %v325
      %v327 = vrot.slane %v326, 1
      %v328 = vmax.f32 %v326, %v327
      %v329 = vsub.f32 %v322, %v328
      %v330 = vmul.f32 %v329, 1.442695
      %v331 = vpow.pop %v330
      %v332 = vrot.slane %v331, 4
      %v333 = vadd.f32 %v331, %v332
      %v334 = vrot.slane %v333, 2
      %v335 = vadd.f32 %v333, %v334
      %v336 = vrot.slane %v335, 1
      %v337 = vadd.f32 %v335, %v336
      %v338 = vlog2.pop %v337
      %v339 = vmul.f32 %v338, 0.6931472
      %v340 = vadd.f32 %v339, %v328
      %v341 = vsel %vm321, %v322, 0.0
      %v342 = vrot.slane %v341, 4
      %v343 = vadd.f32 %v341, %v342
      %v344 = vrot.slane %v343, 2
      %v345 = vadd.f32 %v343, %v344
      %v346 = vrot.slane %v345, 1
      %v347 = vadd.f32 %v345, %v346
      %v348 = vsub.f32 %v347, %v340
      %349 = vst [vmem:[%s297] sm:$0x1] %v348
      %v350 = vld [vmem:[%s290] sm:$0xff]
      %v351 = vrot.slane %v350, 4
      %v352 = vmax.f32 %v350, %v351
      %v353 = vrot.slane %v352, 2
      %v354 = vmax.f32 %v352, %v353
      %v355 = vrot.slane %v354, 1
      %v356 = vmax.f32 %v354, %v355
      %v357 = vsub.f32 %v350, %v356
      %v358 = vmul.f32 %v357, 1.442695
      %v359 = vpow.pop %v358
      %v360 = vrot.slane %v359, 4
      %v361 = vadd.f32 %v359, %v360
      %v362 = vrot.slane %v361, 2
      %v363 = vadd.f32 %v361, %v362
      %v364 = vrot.slane %v363, 1
      %v365 = vadd.f32 %v363, %v364
      %v366 = vlog2.pop %v365
      %v367 = vmul.f32 %v366, 0.6931472
      %v368 = vadd.f32 %v367, %v356
      %v369 = vsel %vm321, %v350, 0.0
      %v370 = vrot.slane %v369, 4
      %v371 = vadd.f32 %v369, %v370
      %v372 = vrot.slane %v371, 2
      %v373 = vadd.f32 %v371, %v372
      %v374 = vrot.slane %v373, 1
      %v375 = vadd.f32 %v373, %v374
      %v376 = vsub.f32 %v375, %v368
      %v377 = vsub.f32 0.0, %v376
      %v378 = vsel %vm313, %v377, 0.0
      %vm379 = vcmask 1040384
      %v380 = vsel %vm379, %v378, 0.0
      %381 = vadd.xlane.f32.xlu0 %v380
      %v382 = vpop.xlane.xlu0 %381
      %v383 = vsel %vm313, 1, 0
      %v384 = vcvt.s32.f32 %v383
      %v385 = vsel %vm379, %v384, 0.0
      %386 = vadd.xlane.f32.xlu0 %v385
      %v387 = vpop.xlane.xlu0 %386
      %vm388 = vcmp.eq.s32.totalorder %v306, 0
      %vm389 = vcmp.eq.s32.totalorder %v306, 1
      %v390 = vsel %vm389, %v387, 0.0
      %v391 = vsel %vm388, %v382, %v390
      %392 = vst [vmem:[%s304] sm:$0x1] %v391
      %p393 = scmp.lt.s32.totalorder %s20, 1
      %s394 = scalar_select %p393, %s20, 1
      %p395 = scmp.lt.s32.totalorder %s21, 1
      %s396 = scalar_select %p395, %s21, 1
      %s397 = smul.addr %s394, 2
      %s398 = sadd.s32 %s396, %s397
      %s399 = scalar_lea.vmem %s3, %s398
      %p400 = scmp.lt.s32.totalorder %s20, 1
      %s401 = scalar_select %p400, %s20, 1
      %p402 = scmp.lt.s32.totalorder %s21, 1
      %s403 = scalar_select %p402, %s21, 1
      %s404 = smul.addr %s401, 2
      %s405 = sadd.s32 %s403, %s404
      %s406 = scalar_lea.vmem %s4, %s405
      // Predicated region
      $region33: #{fs_aux_ohem_ce_loss.1} parent=31 // pred_check
        %p407 = pneg %p132
      $region34: #{fs_aux_ohem_ce_loss.1} parent=31 // pred_check_branch
        %409 = sbr.rel (%p407) target = $region36
      $region35: #{fs_aux_ohem_ce_loss.1} parent=31 // pred_region
        _
      $region36: #{fs_aux_ohem_ce_loss.1} parent=31 // pred_fallthru
        _
      // Predicated region
      $region37: #{fs_aux_ohem_ce_loss.1} parent=31 // pred_check
        %p410 = pneg %p160
      $region38: #{fs_aux_ohem_ce_loss.1} parent=31 // pred_check_branch
        %412 = sbr.rel (%p410) target = $region40
      $region39: #{fs_aux_ohem_ce_loss.1} parent=31 // pred_region
        _
      $region40: #{fs_aux_ohem_ce_loss.1} parent=31 // pred_fallthru
        _
    $region32: #{fs_aux_ohem_ce_loss.1} parent=5 // pred_fallthru
      _
    %p413 = scmp.le.s32.totalorder 2, %s11
    // Predicated region
    $region41: #{fs_aux_ohem_ce_loss.1} parent=5 // pred_check
      %p414 = pneg %p413
    $region42: #{fs_aux_ohem_ce_loss.1} parent=5 // pred_check_branch
      %416 = sbr.rel (%p414) target = $region44
    $region43: #{fs_aux_ohem_ce_loss.1} parent=5 // pred_region
      %s417 = ssub.s32 %s11, 2
      // Predicated region
      $region45: #{fs_aux_ohem_ce_loss.1} parent=43 // pred_check
        %p418 = pneg %p138
      $region46: #{fs_aux_ohem_ce_loss.1} parent=43 // pred_check_branch
        %420 = sbr.rel (%p418) target = $region48
      $region47: #{fs_aux_ohem_ce_loss.1} parent=43 // pred_region
        %p421 = scmp.lt.s32.totalorder %s22, 1
        %s422 = scalar_select %p421, %s22, 1
        %p423 = scmp.lt.s32.totalorder %s23, 1
        %s424 = scalar_select %p423, %s23, 1
        %s425 = smul.addr %s422, 2
        %s426 = sadd.s32 %s424, %s425
        %s427 = scalar_lea.vmem %s3, %s426
      $region48: #{fs_aux_ohem_ce_loss.1} parent=43 // pred_fallthru
        _
      // Predicated region
      $region49: #{fs_aux_ohem_ce_loss.1} parent=43 // pred_check
        %p428 = pneg %p166
      $region50: #{fs_aux_ohem_ce_loss.1} parent=43 // pred_check_branch
        %430 = sbr.rel (%p428) target = $region52
      $region51: #{fs_aux_ohem_ce_loss.1} parent=43 // pred_region
        %p431 = scmp.lt.s32.totalorder %s22, 1
        %s432 = scalar_select %p431, %s22, 1
        %p433 = scmp.lt.s32.totalorder %s23, 1
        %s434 = scalar_select %p433, %s23, 1
        %s435 = smul.addr %s432, 2
        %s436 = sadd.s32 %s434, %s435
        %s437 = scalar_lea.vmem %s4, %s436
      $region52: #{fs_aux_ohem_ce_loss.1} parent=43 // pred_fallthru
        _
    $region44: #{fs_aux_ohem_ce_loss.1} parent=5 // pred_fallthru
      _
  $region6: #{fs_aux_ohem_ce_loss.1} parent=0 // loop_footer
    %s15 = sadd.s32 1, %s11
  $region7: #{fs_aux_ohem_ce_loss.1} parent=0 // loop_footer_branch
    %10 = sbr.rel target = $region3
  $region8: #{fs_aux_ohem_ce_loss.1} parent=0 // loop_exit
    _

</llo_original>
